<compile_context>
chip_gen: v5e
topology: v5e:2x2
jax: 0.10.0
libtpu: 0.0.40
codegen_flags: <defaults>
</compile_context>

<pallas_src>
import functools

import jax
import jax.numpy as jnp
from jax.experimental import pallas as pl
from jax.experimental.pallas import tpu as pltpu

BN_EPS = 1e-5  # PyTorch BatchNorm1d default eps


def _round_up(n, m):
    return ((n + m - 1) // m) * m


def _rbf_head_kernel(x_ref, bn_ref, centers_ref, rbf_ref, w_comb_ref, b_comb_ref, out_ref):
    # ---- BatchNorm1d folded to a single FMA (row 0 = scale, row 1 = shift) ----
    xn = x_ref[...] * bn_ref[0:1, :] + bn_ref[1:2, :]                       # (tb, F)

    # ---- Gaussian RBF with beta folded into the weights ----
    # exponent = 2*beta*(x.c) - beta*||c||^2 - beta*||x||^2 = -beta*||x - c||^2
    cross = jnp.dot(xn, centers_ref[...],
                    preferred_element_type=jnp.float32)                      # (tb, C)
    x_sq = jnp.sum(xn * xn, axis=-1, keepdims=True)                          # (tb, 1)
    exponent = cross + rbf_ref[0:1, :] + x_sq * rbf_ref[1:2, :]              # (tb, C)
    phi = jnp.exp(exponent)                                                  # (tb, C)

    # ---- fused (RBF-Linear o fc) + sigmoid ----
    logits = jnp.dot(phi, w_comb_ref[...],
                     preferred_element_type=jnp.float32) + b_comb_ref[...]   # (tb, O)
    out_ref[...] = jax.nn.sigmoid(logits)


@functools.partial(jax.jit, static_argnames=("block_b",))
def rbf_classification_head(x, params, *, block_b=8192):
    """x: (B, in_features) f32. Returns (B, out_features) f32 probabilities."""
    B, F = x.shape
    H, C = params["w_rbf"].shape
    O = params["w_fc"].shape[0]

    # ---- fold all per-call constants (wrapper-side, traced once under jit) ----
    bn_scale = params["bn_gamma"] * jax.lax.rsqrt(params["bn_var"] + BN_EPS)    # (1, F)
    bn_shift = params["bn_beta"] - params["bn_mean"] * bn_scale                 # (1, F)
    bn_consts = jnp.concatenate([bn_scale, bn_shift], axis=0)                   # (2, F)

    beta = params["rbf_beta"]                                                   # (1, C)
    centers_scaled = params["centers"].T * (2.0 * beta)                         # (F, C)
    c_sq = jnp.sum(params["centers"] * params["centers"],
                   axis=-1, keepdims=True).T                                    # (1, C)
    rbf_consts = jnp.concatenate([-beta * c_sq, -beta], axis=0)                 # (2, C)

    # Fuse the two linears (no nonlinearity between them in this head).
    # TODO(synk): if HRadNet's RBF applies an activation after its Linear, un-fuse w_comb.
    w_comb = params["w_rbf"].T @ params["w_fc"].T                               # (C, O)
    b_comb = params["b_rbf"] @ params["w_fc"].T + params["b_fc"]                # (1, O)

    # ---- batch tiling: big tiles, but keep >= 2 grid steps when possible (v7x megacore) ----
    tb = min(block_b, _round_up(B, 8))
    if tb > 8 and _round_up(B, tb) // tb < 2:
        tb = max(8, _round_up(tb // 2, 8))
    Bp = _round_up(B, tb)
    x_p = jnp.pad(x, ((0, Bp - B), (0, 0)))
    grid = (Bp // tb,)

    const_bytes = (2 * F + F * C + 2 * C + C * O + O) * 4
    cost = pl.CostEstimate(
        flops=2 * Bp * (F * C + C * O),
        transcendentals=Bp * C,
        bytes_accessed=Bp * F * 4 + Bp * O * 4 + const_bytes,
    )

    in_specs = [
        pl.BlockSpec((tb, F), lambda i: (i, 0)),     # x: streamed over batch
        pl.BlockSpec((2, F), lambda i: (0, 0)),      # [bn_scale; bn_shift]     (resident)
        pl.BlockSpec((F, C), lambda i: (0, 0)),      # 2*beta*centers^T         (resident)
        pl.BlockSpec((2, C), lambda i: (0, 0)),      # [-beta*||c||^2; -beta]   (resident)
        pl.BlockSpec((C, O), lambda i: (0, 0)),      # fused weight             (resident)
        pl.BlockSpec((1, O), lambda i: (0, 0)),      # fused bias               (resident)
    ]
    out_specs = pl.BlockSpec((tb, O), lambda i: (i, 0))

    out_padded = pl.pallas_call(
        _rbf_head_kernel,
        out_shape=jax.ShapeDtypeStruct((Bp, O), jnp.float32),
        grid=grid,
        in_specs=in_specs,
        out_specs=out_specs,
        compiler_params=pltpu.CompilerParams(
            dimension_semantics=("parallel",)),
        cost_estimate=cost,
    )(x_p, bn_consts, centers_scaled, rbf_consts, w_comb, b_comb)

    return out_padded[:B]


def init_params(key, in_features, n_centers, hidden_features, out_features):
    ks = jax.random.split(key, 6)
    f32 = jnp.float32
    return {
        # BatchNorm1d (affine + running stats), stored as (1, F) rows
        "bn_gamma": jnp.ones((1, in_features), f32),
        "bn_beta": jnp.zeros((1, in_features), f32),
        "bn_mean": 0.1 * jax.random.normal(ks[0], (1, in_features), f32),
        "bn_var": jnp.ones((1, in_features), f32)
                  + 0.05 * jax.random.uniform(ks[1], (1, in_features), f32),
        # RBF layer
        "centers": jax.random.normal(ks[2], (n_centers, in_features), f32),
        "rbf_beta": jnp.ones((1, n_centers), f32),            # inverse squared widths
        "w_rbf": 0.1 * jax.random.normal(ks[3], (hidden_features, n_centers), f32),
        "b_rbf": jnp.zeros((1, hidden_features), f32),
        # Final Linear
        "w_fc": 0.1 * jax.random.normal(ks[4], (out_features, hidden_features), f32),
        "b_fc": 0.01 * jax.random.normal(ks[5], (1, out_features), f32),
    }


def _reference(x, p):
    """Pure-JAX reference (mirrors the PyTorch forward, un-fused)."""
    xn = (x - p["bn_mean"]) / jnp.sqrt(p["bn_var"] + BN_EPS) * p["bn_gamma"] + p["bn_beta"]
    d2 = jnp.sum((xn[:, None, :] - p["centers"][None, :, :]) ** 2, axis=-1)
    phi = jnp.exp(-p["rbf_beta"] * d2)
    h = phi @ p["w_rbf"].T + p["b_rbf"]
    return jax.nn.sigmoid(h @ p["w_fc"].T + p["b_fc"])


if __name__ == "__main__":
    B, IN_F, N_CENTERS, HIDDEN, OUT_F = 8, 32, 16, 32, 4

    key = jax.random.PRNGKey(0)
    k_x, k_p = jax.random.split(key)
    x = jax.random.normal(k_x, (B, IN_F), jnp.float32)
    params = init_params(k_p, IN_F, N_CENTERS, HIDDEN, OUT_F)

    out = rbf_classification_head(x, params)
    out = jax.block_until_ready(out)

    ref = _reference(x, params)
    assert out.shape == (B, OUT_F)
    assert jnp.allclose(out, ref, atol=1e-5, rtol=1e-5), "mismatch vs reference"
    print("KERNEL_OK")
</pallas_src>

<mosaic_0001>
module attributes {stable_mosaic.version = 11 : i64} {
  func.func @_rbf_head_kernel(%arg0: i32, %arg1: memref<8x32xf32, #tpu.memory_space<vmem>>, %arg2: memref<2x32xf32, #tpu.memory_space<vmem>>, %arg3: memref<32x16xf32, #tpu.memory_space<vmem>>, %arg4: memref<2x16xf32, #tpu.memory_space<vmem>>, %arg5: memref<16x4xf32, #tpu.memory_space<vmem>>, %arg6: memref<1x4xf32, #tpu.memory_space<vmem>>, %arg7: memref<8x4xf32, #tpu.memory_space<vmem>>) attributes {dimension_semantics = [#tpu.dimension_semantics<parallel>], iteration_bounds = array<i64: 1>, scalar_prefetch = 0 : i64, scratch_operands = 0 : i64, tpu.core_type = #tpu.core_type<tc>, window_params = [{transform_indices = @transform_0, window_bounds = array<i64: 8, 32>}, {pipeline_mode = #tpu.pipeline_mode<synchronous>, transform_indices = @transform_1, window_bounds = array<i64: 2, 32>}, {pipeline_mode = #tpu.pipeline_mode<synchronous>, transform_indices = @transform_2, window_bounds = array<i64: 32, 16>}, {pipeline_mode = #tpu.pipeline_mode<synchronous>, transform_indices = @transform_3, window_bounds = array<i64: 2, 16>}, {pipeline_mode = #tpu.pipeline_mode<synchronous>, transform_indices = @transform_4, window_bounds = array<i64: 16, 4>}, {pipeline_mode = #tpu.pipeline_mode<synchronous>, transform_indices = @transform_5, window_bounds = array<i64: 1, 4>}, {transform_indices = @transform_6, window_bounds = array<i64: 8, 4>}]} {
    %c0 = arith.constant 0 : index
    %c0_0 = arith.constant 0 : index
    %0 = vector.load %arg1[%c0, %c0_0] : memref<8x32xf32, #tpu.memory_space<vmem>>, vector<8x32xf32>
    %c0_1 = arith.constant 0 : index
    %c0_2 = arith.constant 0 : index
    %1 = vector.load %arg2[%c0_1, %c0_2] : memref<2x32xf32, #tpu.memory_space<vmem>>, vector<1x32xf32>
    %2 = vector.broadcast %1 : vector<1x32xf32> to vector<8x32xf32>
    %3 = arith.mulf %0, %2 : vector<8x32xf32>
    %c1 = arith.constant 1 : index
    %c0_3 = arith.constant 0 : index
    %4 = vector.load %arg2[%c1, %c0_3] : memref<2x32xf32, #tpu.memory_space<vmem>>, vector<1x32xf32>
    %5 = vector.broadcast %4 : vector<1x32xf32> to vector<8x32xf32>
    %6 = arith.addf %3, %5 : vector<8x32xf32>
    %c0_4 = arith.constant 0 : index
    %c0_5 = arith.constant 0 : index
    %7 = vector.load %arg3[%c0_4, %c0_5] : memref<32x16xf32, #tpu.memory_space<vmem>>, vector<32x16xf32>
    %cst = arith.constant dense<0.000000e+00> : vector<8x16xf32>
    %8 = tpu.matmul %6, %7, %cst {dimension_numbers = #tpu.dot_dimension_numbers<[1], [0], [0], [1], [0, 0, 1, 1], [], []>} : vector<8x32xf32>, vector<32x16xf32>, vector<8x16xf32> -> vector<8x16xf32>
    %9 = arith.mulf %6, %6 : vector<8x32xf32>
    %cst_6 = arith.constant dense<0.000000e+00> : vector<8xf32>
    %10 = vector.multi_reduction <add>, %9, %cst_6 [1] : vector<8x32xf32> to vector<8xf32>
    %11 = vector.shape_cast %10 : vector<8xf32> to vector<8x1xf32>
    %c0_7 = arith.constant 0 : index
    %c0_8 = arith.constant 0 : index
    %12 = vector.load %arg4[%c0_7, %c0_8] : memref<2x16xf32, #tpu.memory_space<vmem>>, vector<1x16xf32>
    %13 = vector.broadcast %12 : vector<1x16xf32> to vector<8x16xf32>
    %14 = arith.addf %8, %13 : vector<8x16xf32>
    %c1_9 = arith.constant 1 : index
    %c0_10 = arith.constant 0 : index
    %15 = vector.load %arg4[%c1_9, %c0_10] : memref<2x16xf32, #tpu.memory_space<vmem>>, vector<1x16xf32>
    %16 = vector.broadcast %11 : vector<8x1xf32> to vector<8x16xf32>
    %17 = vector.broadcast %15 : vector<1x16xf32> to vector<8x16xf32>
    %18 = arith.mulf %16, %17 : vector<8x16xf32>
    %19 = arith.addf %14, %18 : vector<8x16xf32>
    %20 = math.exp %19 : vector<8x16xf32>
    %c0_11 = arith.constant 0 : index
    %c0_12 = arith.constant 0 : index
    %21 = vector.load %arg5[%c0_11, %c0_12] : memref<16x4xf32, #tpu.memory_space<vmem>>, vector<16x4xf32>
    %cst_13 = arith.constant dense<0.000000e+00> : vector<8x4xf32>
    %22 = tpu.matmul %20, %21, %cst_13 {dimension_numbers = #tpu.dot_dimension_numbers<[1], [0], [0], [1], [0, 0, 1, 1], [], []>} : vector<8x16xf32>, vector<16x4xf32>, vector<8x4xf32> -> vector<8x4xf32>
    %c0_14 = arith.constant 0 : index
    %c0_15 = arith.constant 0 : index
    %23 = vector.load %arg6[%c0_14, %c0_15] : memref<1x4xf32, #tpu.memory_space<vmem>>, vector<1x4xf32>
    %24 = vector.broadcast %23 : vector<1x4xf32> to vector<8x4xf32>
    %25 = arith.addf %22, %24 : vector<8x4xf32>
    %26 = arith.negf %25 : vector<8x4xf32>
    %27 = math.exp %26 : vector<8x4xf32>
    %cst_16 = arith.constant 1.000000e+00 : f32
    %28 = vector.broadcast %cst_16 : f32 to vector<8x4xf32>
    %29 = arith.addf %28, %27 : vector<8x4xf32>
    %30 = arith.divf %28, %29 : vector<8x4xf32>
    %c0_17 = arith.constant 0 : index
    %c0_18 = arith.constant 0 : index
    %31 = vector.load %arg7[%c0_17, %c0_18] : memref<8x4xf32, #tpu.memory_space<vmem>>, vector<8x4xf32>
    tpu.vector_store %arg7[%c0_17, %c0_18], %30 {strides = array<i32>} : memref<8x4xf32, #tpu.memory_space<vmem>>, vector<8x4xf32>,
    return
  }
  func.func @transform_0(%arg0: i32) -> (i32, i32) {
    %c0_i32 = arith.constant 0 : i32
    %c0_i32_0 = arith.constant 0 : i32
    return %arg0, %c0_i32 : i32, i32
  }
  func.func @transform_1(%arg0: i32) -> (i32, i32) {
    %c0_i32 = arith.constant 0 : i32
    %c0_i32_0 = arith.constant 0 : i32
    %c0_i32_1 = arith.constant 0 : i32
    return %c0_i32, %c0_i32_0 : i32, i32
  }
  func.func @transform_2(%arg0: i32) -> (i32, i32) {
    %c0_i32 = arith.constant 0 : i32
    %c0_i32_0 = arith.constant 0 : i32
    %c0_i32_1 = arith.constant 0 : i32
    return %c0_i32, %c0_i32_0 : i32, i32
  }
  func.func @transform_3(%arg0: i32) -> (i32, i32) {
    %c0_i32 = arith.constant 0 : i32
    %c0_i32_0 = arith.constant 0 : i32
    %c0_i32_1 = arith.constant 0 : i32
    return %c0_i32, %c0_i32_0 : i32, i32
  }
  func.func @transform_4(%arg0: i32) -> (i32, i32) {
    %c0_i32 = arith.constant 0 : i32
    %c0_i32_0 = arith.constant 0 : i32
    %c0_i32_1 = arith.constant 0 : i32
    return %c0_i32, %c0_i32_0 : i32, i32
  }
  func.func @transform_5(%arg0: i32) -> (i32, i32) {
    %c0_i32 = arith.constant 0 : i32
    %c0_i32_0 = arith.constant 0 : i32
    %c0_i32_1 = arith.constant 0 : i32
    return %c0_i32, %c0_i32_0 : i32, i32
  }
  func.func @transform_6(%arg0: i32) -> (i32, i32) {
    %c0_i32 = arith.constant 0 : i32
    %c0_i32_0 = arith.constant 0 : i32
    return %arg0, %c0_i32 : i32, i32
  }
}

</mosaic_0001>

<llo_original>
// kernel: rbf_classification_head.1
$region0: #{rbf_classification_head.1}
  #allocation0 [shape = 'u32[]', space=smem, size = 0x4, offset = 0x4, fixed_abs, tag = 'smem constant byte address 0x4 - core index']
  #allocation1 [shape = 'u32[72,128]{1,0:T(1,128)}', space=vmem, size = 0x9000, scoped, tag = 'internal scratch']
  %s0 = inlined_call_operand.vmem [shape: f32[8,32], index: 0, kind: input, shape index: {}]
  %s1 = inlined_call_operand.vmem [shape: f32[2,32], index: 1, kind: input, shape index: {}]
  %s2 = inlined_call_operand.vmem [shape: f32[32,16], index: 2, kind: input, shape index: {}]
  %s3 = inlined_call_operand.vmem [shape: f32[2,16], index: 3, kind: input, shape index: {}]
  %s4 = inlined_call_operand.vmem [shape: f32[16,4], index: 4, kind: input, shape index: {}]
  %s5 = inlined_call_operand.vmem [shape: f32[1,4], index: 5, kind: input, shape index: {}]
  %s6 = inlined_call_operand.vmem [shape: f32[8,4], index: 6, kind: output, shape index: {}]
  %s7 = sld [smem:[#allocation0]]
  $region34: #{rbf_classification_head.1} parent=0
    _
  %s9 = ssub.s32 1, %s7
  %s10 = scalar_select 0, %s9, %s7
  // Predicated region
  $region2: #{rbf_classification_head.1} parent=0 // pred_check
    _
  $region3: #{rbf_classification_head.1} parent=0 // pred_check_branch
    %12 = sbr.rel (0) target = $region5
  $region4: #{rbf_classification_head.1} parent=0 // pred_region
    _
  $region5: #{rbf_classification_head.1} parent=0 // pred_fallthru
    _
  // Predicated region
  $region6: #{rbf_classification_head.1} parent=0 // pred_check
    _
  $region7: #{rbf_classification_head.1} parent=0 // pred_check_branch
    %14 = sbr.rel (0) target = $region9
  $region8: #{rbf_classification_head.1} parent=0 // pred_region
    _
  $region9: #{rbf_classification_head.1} parent=0 // pred_fallthru
    _
  // Predicated region
  $region10: #{rbf_classification_head.1} parent=0 // pred_check
    _
  $region11: #{rbf_classification_head.1} parent=0 // pred_check_branch
    %16 = sbr.rel (0) target = $region13
  $region12: #{rbf_classification_head.1} parent=0 // pred_region
    _
  $region13: #{rbf_classification_head.1} parent=0 // pred_fallthru
    _
  // Predicated region
  $region14: #{rbf_classification_head.1} parent=0 // pred_check
    _
  $region15: #{rbf_classification_head.1} parent=0 // pred_check_branch
    %18 = sbr.rel (0) target = $region17
  $region16: #{rbf_classification_head.1} parent=0 // pred_region
    _
  $region17: #{rbf_classification_head.1} parent=0 // pred_fallthru
    _
  // Predicated region
  $region18: #{rbf_classification_head.1} parent=0 // pred_check
    _
  $region19: #{rbf_classification_head.1} parent=0 // pred_check_branch
    %20 = sbr.rel (0) target = $region21
  $region20: #{rbf_classification_head.1} parent=0 // pred_region
    _
  $region21: #{rbf_classification_head.1} parent=0 // pred_fallthru
    _
  // Predicated region
  $region22: #{rbf_classification_head.1} parent=0 // pred_check
    _
  $region23: #{rbf_classification_head.1} parent=0 // pred_check_branch
    %22 = sbr.rel (0) target = $region25
  $region24: #{rbf_classification_head.1} parent=0 // pred_region
    _
  $region25: #{rbf_classification_head.1} parent=0 // pred_fallthru
    _
  %v23 = vld [vmem:[%s0] sm:$0xff]
  %v24 = vld [vmem:[%s1] sm:$0x1]
  %v25 = vperm.slane %v24, 0
  %v26 = vmul.f32 %v23, %v25
  %v27 = vld [vmem:[%s1 + $0x1] sm:$0x1]
  %v28 = vperm.slane %v27, 0
  %v29 = vadd.f32 %v26, %v28
  %v30 = vld [vmem:[%s2] sm:$0xff]
  %v31 = vld [vmem:[%s2 + $0x8] sm:$0xff]
  %v32 = vld [vmem:[%s2 + $0x10] sm:$0xff]
  %v33 = vld [vmem:[%s2 + $0x18] sm:$0xff]
  %v34 = vmul.f32 %v29, %v29
  %vm35 = vcmask 261120
  %v36 = vsel %vm35, %v34, 0.0
  %37 = vadd.xlane.f32.xlu0 %v36
  %v38 = vpop.xlane.xlu0 %37
  %v39 = vld [vmem:[%s3] sm:$0x1]
  %v40 = vperm.slane %v39, 0
  %v42 = vsel %vm35, %v29, 0
  %44 = vmatpush.msra.mxu0 0.0
  %45 = vmatpush.msra.mxu0 0.0
  %46 = vmatpush.msra.mxu0 0.0
  %47 = vmatpush.msra.mxu0 0.0
  %48 = vmatpush.msra.mxu0 0.0
  %49 = vmatpush.msra.mxu0 0.0
  %50 = vmatpush.msra.mxu0 0.0
  %51 = vmatpush.msra.mxu0 0.0
  %52 = vmatpush.msra.mxu0 0.0
  %53 = vmatpush.msra.mxu0 0.0
  %54 = vmatpush.msra.mxu0 0.0
  %55 = vmatpush.msra.mxu0 0.0
  %56 = vmatpush.msra.mxu0 %v33
  %57 = vmatpush.msra.mxu0 %v32
  %58 = vmatpush.msra.mxu0 %v31
  %59 = vmatpush.msra.mxu0 %v30
  %60 = vmatmul.f32.gmra.mxu0 %v42
  %v61 = vpop.f32.mrf.mxu0
  %v62 = vadd.f32 %v40, %v61
  %63 = vdwg.mxu0
  %v64 = vld [vmem:[%s3 + $0x1] sm:$0x1]
  %v65 = vperm.slane %v64, 0
  %v66 = vmul.f32 %v38, %v65
  %v67 = vadd.f32 %v62, %v66
  %v68 = vmul.f32 %v67, 1.442695
  %v69 = vpow.pop %v68
  %v70 = vld [vmem:[%s4] sm:$0xff]
  %v71 = vld [vmem:[%s4 + $0x8] sm:$0xff]
  %v72 = vld [vmem:[%s5] sm:$0x1]
  %v74 = vperm.slane %v72, 0
  %vm76 = vcmask 130048
  %v78 = vsel %vm76, %v69, 0
  %80 = vmatpush.msra.mxu0 0.0
  %81 = vmatpush.msra.mxu0 0.0
  %82 = vmatpush.msra.mxu0 0.0
  %83 = vmatpush.msra.mxu0 0.0
  %84 = vmatpush.msra.mxu0 0.0
  %85 = vmatpush.msra.mxu0 0.0
  %86 = vmatpush.msra.mxu0 0.0
  %87 = vmatpush.msra.mxu0 0.0
  %88 = vmatpush.msra.mxu0 0.0
  %89 = vmatpush.msra.mxu0 0.0
  %90 = vmatpush.msra.mxu0 0.0
  %91 = vmatpush.msra.mxu0 0.0
  %92 = vmatpush.msra.mxu0 0.0
  %93 = vmatpush.msra.mxu0 0.0
  %94 = vmatpush.msra.mxu0 %v71
  %95 = vmatpush.msra.mxu0 %v70
  %96 = vmatmul.f32.gmra.mxu0 %v78
  %v97 = vpop.f32.mrf.mxu0
  %v98 = vadd.f32 %v74, %v97
  %99 = vdwg.mxu0
  %v100 = vxor.u32 %v98, 2147483648
  %v101 = vmul.f32 %v100, 1.442695
  %v102 = vpow.pop %v101
  %v103 = vadd.f32 %v102, 1.0
  %v104 = vrcp.pop %v103
  %v105 = vmul.f32 %v103, %v104
  %v106 = vsub.f32 1.0, %v105
  %v107 = vmul.f32 %v104, %v106
  %v108 = vadd.f32 %v104, %v107
  %vm109 = vweird.f32 %v103
  %vm110 = vweird.f32 %v104
  %vm111 = vmor %vm109, %vm110
  %v112 = vsel %vm111, %v104, %v108
  %v113 = vand.u32 2147483647, %v103
  %vm114 = vcmp.eq.f32.partialorder %v113, 8.507059e+37
  %v115 = vand.u32 %v103, 2147483648
  %v116 = vor.u32 1.1754944e-38, %v115
  %v117 = vsel %vm114, %v116, %v112
  %v118 = vmul.f32 1.0, %v117
  %vm119 = vcmask 31744
  %120 = vst.msk [vmem:[%s6] sm:$0xff] %vm119, %v118
  // Predicated region
  $region26: #{rbf_classification_head.1} parent=0 // pred_check
    _
  $region27: #{rbf_classification_head.1} parent=0 // pred_check_branch
    %122 = sbr.rel (0) target = $region29
  $region28: #{rbf_classification_head.1} parent=0 // pred_region
    _
  $region29: #{rbf_classification_head.1} parent=0 // pred_fallthru
    _
  // Predicated region
  $region30: #{rbf_classification_head.1} parent=0 // pred_check
    _
  $region31: #{rbf_classification_head.1} parent=0 // pred_check_branch
    %124 = sbr.rel (0) target = $region33
  $region32: #{rbf_classification_head.1} parent=0 // pred_region
    _
  $region33: #{rbf_classification_head.1} parent=0 // pred_fallthru
    _

</llo_original>
